<compile_context>
chip_gen: v5e
topology: v5e:2x2
jax: 0.10.0
libtpu: 0.0.40
codegen_flags: <defaults>
</compile_context>

<pallas_src>
import jax
import jax.numpy as jnp
from jax.experimental import pallas as pl
from jax.experimental.pallas import tpu as pltpu  # noqa: F401  (TPU backend)

BN_EPS = 1e-5


def _rup8(n):
    return ((n + 7) // 8) * 8


def _batchnorm_train(h, gamma, beta):
    # BatchNorm1d training mode: batch stats, biased variance, eps=1e-5.
    # scale/shift precomputed once per feature -> per-element work is mul+add.
    mean = jnp.mean(h, axis=0, keepdims=True)
    mean_sq = jnp.mean(h * h, axis=0, keepdims=True)
    var = jnp.maximum(mean_sq - mean * mean, 0.0)
    scale = gamma * jax.lax.rsqrt(var + BN_EPS)
    shift = beta - mean * scale
    return h * scale + shift


def make_kernel(wide_dim, dense_dim, offs):
    off_wide, off_d12, off_d3, off_d4, off_l1b, off_vec = offs

    def kernel(x_catg_ref, x_cont_ref, w_ref, out_ref):
        f32 = jnp.float32

        # Static sublane slices at 8-aligned offsets on the packed operand.
        w_wide_f = w_ref[off_wide:off_wide + wide_dim, :]
        w_d12 = w_ref[off_d12:off_d12 + dense_dim, :]
        w_d3 = w_ref[off_d3:off_d3 + 64, :]
        w_d4 = w_ref[off_d4:off_d4 + 64, :]
        w_l1b = w_ref[off_l1b:off_l1b + 64, :]
        vecs = w_ref[off_vec:off_vec + 8, :]
        b_d12, g1, be1 = vecs[0:1], vecs[1:2], vecs[2:3]
        b_d3, g2, be2 = vecs[3:4], vecs[4:5], vecs[5:6]
        b_d4, b_head = vecs[6:7], vecs[7:8]

        # Wide branch folded all the way to the head: x_catg @ (w_wide @ w_l1a)
        wide_out = jnp.dot(x_catg_ref[...], w_wide_f,
                           preferred_element_type=f32)

        # Deep layers 1+2 folded: x_cont @ (w_d1 @ w_d2) + folded bias
        h = jnp.dot(x_cont_ref[...], w_d12, preferred_element_type=f32) + b_d12

        # deep: ReLU -> BN -> Linear(64,64) -> ReLU -> BN
        #       -> Linear(64,32 padded to 64) -> ReLU
        h = jnp.maximum(h, 0.0)
        h = _batchnorm_train(h, g1, be1)
        h = jnp.dot(h, w_d3, preferred_element_type=f32) + b_d3
        h = jnp.maximum(h, 0.0)
        h = _batchnorm_train(h, g2, be2)
        h = jnp.maximum(
            jnp.dot(h, w_d4, preferred_element_type=f32) + b_d4, 0.0)

        # head: wide contribution + deep @ w_l1b (zero-padded rows) + bias
        out = (wide_out
               + jnp.dot(h, w_l1b, preferred_element_type=f32)
               + b_head)
        out_ref[...] = out.astype(out_ref.dtype)

    return kernel


def make_wide_and_deep(wide_dim, dense_dim, offs, packed_rows):
    kernel = make_kernel(wide_dim, dense_dim, offs)

    @jax.jit
    def fwd(x_catg, x_cont, packed_w):
        B = x_catg.shape[0]
        # Advisory cost hint so XLA schedules this tiny custom call sensibly.
        flops = 2 * B * (wide_dim * 64 + dense_dim * 64 + 3 * 64 * 64)
        bytes_accessed = 4 * (B * wide_dim + B * dense_dim
                              + packed_rows * 64 + B * 64)
        ce = pl.CostEstimate(flops=flops, transcendentals=2 * 64,
                             bytes_accessed=bytes_accessed)
        # Everything is tiny -> single grid point, whole arrays in VMEM via
        # default BlockSpecs; whole batch in one block keeps BN stats exact.
        return pl.pallas_call(
            kernel,
            out_shape=jax.ShapeDtypeStruct((B, 64), jnp.float32),
            cost_estimate=ce,
        )(x_catg, x_cont, packed_w)

    return fwd


# ----------------------------- parameter prep -------------------------------

def _linear_params(key, in_dim, out_dim):
    # PyTorch nn.Linear default init: U(-1/sqrt(in), 1/sqrt(in)).
    kw, kb = jax.random.split(key)
    bound = 1.0 / (in_dim ** 0.5)
    w = jax.random.uniform(kw, (in_dim, out_dim), jnp.float32, -bound, bound)
    b = jax.random.uniform(kb, (1, out_dim), jnp.float32, -bound, bound)
    return w, b


def make_params(key, wide_dim, dense_dim):
    """Raw, PyTorch-equivalent parameters (weights stored as [in, out])."""
    keys = jax.random.split(key, 6)
    p = {}
    p["w_wide"], p["b_wide"] = _linear_params(keys[0], wide_dim, 128)
    p["w_d1"], p["b_d1"] = _linear_params(keys[1], dense_dim, 128)
    p["w_d2"], p["b_d2"] = _linear_params(keys[2], 128, 64)
    p["w_d3"], p["b_d3"] = _linear_params(keys[3], 64, 64)
    p["w_d4"], p["b_d4"] = _linear_params(keys[4], 64, 32)
    p["w_l1"], p["b_l1"] = _linear_params(keys[5], 160, 64)
    # BatchNorm1d(64) affine params: weight=1, bias=0 (PyTorch default).
    p["g1"] = jnp.ones((1, 64), jnp.float32)
    p["be1"] = jnp.zeros((1, 64), jnp.float32)
    p["g2"] = jnp.ones((1, 64), jnp.float32)
    p["be2"] = jnp.zeros((1, 64), jnp.float32)
    return p


def fold_params(p, wide_dim, dense_dim):
    """Exact wrapper-side algebra: fold linear chains, pack EVERYTHING into
    one sublane-stacked (rows, 64) operand with 8-aligned segment offsets."""
    w_l1a = p["w_l1"][:128, :]          # head rows fed by the wide branch
    w_l1b = p["w_l1"][128:, :]          # head rows fed by the deep branch

    # Wide branch is linear all the way to the head.
    w_wide_f = p["w_wide"] @ w_l1a                       # (wide_dim, 64)
    b_head = p["b_l1"] + p["b_wide"] @ w_l1a             # (1, 64)

    # Deep layers 1 and 2 have no activation between them.
    w_d12 = p["w_d1"] @ p["w_d2"]                        # (dense_dim, 64)
    b_d12 = p["b_d1"] @ p["w_d2"] + p["b_d2"]            # (1, 64)

    # Pad Linear(64, 32) to 64 lane-dense outputs (exactly equivalent).
    w_d4p = jnp.zeros((64, 64), jnp.float32).at[:, :32].set(p["w_d4"])
    b_d4p = jnp.zeros((1, 64), jnp.float32).at[:, :32].set(p["b_d4"])
    w_l1bp = jnp.zeros((64, 64), jnp.float32).at[:32, :].set(w_l1b)

    # Pack all (1,64) vectors into one (8,64) slab.
    vecs = jnp.concatenate(
        [b_d12, p["g1"], p["be1"], p["b_d3"], p["g2"], p["be2"], b_d4p, b_head],
        axis=0)

    # Sublane-stack every operand (8-aligned offsets -> free static slices).
    off_wide = 0
    off_d12 = off_wide + _rup8(wide_dim)
    off_d3 = off_d12 + _rup8(dense_dim)
    off_d4 = off_d3 + 64
    off_l1b = off_d4 + 64
    off_vec = off_l1b + 64
    total = off_vec + 8

    packed = jnp.zeros((total, 64), jnp.float32)
    packed = packed.at[off_wide:off_wide + wide_dim].set(w_wide_f)
    packed = packed.at[off_d12:off_d12 + dense_dim].set(w_d12)
    packed = packed.at[off_d3:off_d3 + 64].set(p["w_d3"])
    packed = packed.at[off_d4:off_d4 + 64].set(w_d4p)
    packed = packed.at[off_l1b:off_l1b + 64].set(w_l1bp)
    packed = packed.at[off_vec:off_vec + 8].set(vecs)

    offs = (off_wide, off_d12, off_d3, off_d4, off_l1b, off_vec)
    return packed, offs, total


# ------------------------------- reference ----------------------------------

def _bn_ref(h, gamma, beta):
    mean = jnp.mean(h, axis=0, keepdims=True)
    var = jnp.mean((h - mean) ** 2, axis=0, keepdims=True)
    return (h - mean) * jax.lax.rsqrt(var + BN_EPS) * gamma + beta


def reference(x_catg, x_cont, p):
    out1 = x_catg @ p["w_wide"] + p["b_wide"]
    h = x_cont @ p["w_d1"] + p["b_d1"]
    h = h @ p["w_d2"] + p["b_d2"]
    h = jnp.maximum(h, 0.0)
    h = _bn_ref(h, p["g1"], p["be1"])
    h = h @ p["w_d3"] + p["b_d3"]
    h = jnp.maximum(h, 0.0)
    h = _bn_ref(h, p["g2"], p["be2"])
    h = jnp.maximum(h @ p["w_d4"] + p["b_d4"], 0.0)
    return jnp.concatenate([out1, h], axis=1) @ p["w_l1"] + p["b_l1"]


if __name__ == "__main__":
    B, wide_dim, dense_dim = 8, 16, 32

    key = jax.random.PRNGKey(0)
    k_catg, k_cont, k_params = jax.random.split(key, 3)
    x_catg = jax.random.normal(k_catg, (B, wide_dim), jnp.float32)
    x_cont = jax.random.normal(k_cont, (B, dense_dim), jnp.float32)

    raw_params = make_params(k_params, wide_dim, dense_dim)
    packed_w, offs, packed_rows = fold_params(raw_params, wide_dim, dense_dim)

    fwd = make_wide_and_deep(wide_dim, dense_dim, offs, packed_rows)
    out = fwd(x_catg, x_cont, packed_w)
    out = jax.block_until_ready(out)

    ref = reference(x_catg, x_cont, raw_params)
    assert out.shape == (B, 64)
    assert jnp.allclose(out, ref, atol=1e-4, rtol=1e-4), \
        float(jnp.max(jnp.abs(out - ref)))

    print("KERNEL_OK")
</pallas_src>

<mosaic_0001>
module attributes {stable_mosaic.version = 11 : i64} {
  func.func @kernel(%arg0: memref<8x16xf32, #tpu.memory_space<vmem>>, %arg1: memref<8x32xf32, #tpu.memory_space<vmem>>, %arg2: memref<248x64xf32, #tpu.memory_space<vmem>>, %arg3: memref<8x64xf32, #tpu.memory_space<vmem>>) attributes {dimension_semantics = [], scalar_prefetch = 0 : i64, scratch_operands = 0 : i64, tpu.core_type = #tpu.core_type<tc>} {
    %c0 = arith.constant 0 : index
    %c0_0 = arith.constant 0 : index
    %0 = vector.load %arg2[%c0, %c0_0] : memref<248x64xf32, #tpu.memory_space<vmem>>, vector<16x64xf32>
    %c16 = arith.constant 16 : index
    %c0_1 = arith.constant 0 : index
    %1 = vector.load %arg2[%c16, %c0_1] : memref<248x64xf32, #tpu.memory_space<vmem>>, vector<32x64xf32>
    %c48 = arith.constant 48 : index
    %c0_2 = arith.constant 0 : index
    %2 = vector.load %arg2[%c48, %c0_2] : memref<248x64xf32, #tpu.memory_space<vmem>>, vector<64x64xf32>
    %c112 = arith.constant 112 : index
    %c0_3 = arith.constant 0 : index
    %3 = vector.load %arg2[%c112, %c0_3] : memref<248x64xf32, #tpu.memory_space<vmem>>, vector<64x64xf32>
    %c176 = arith.constant 176 : index
    %c0_4 = arith.constant 0 : index
    %4 = vector.load %arg2[%c176, %c0_4] : memref<248x64xf32, #tpu.memory_space<vmem>>, vector<64x64xf32>
    %c240 = arith.constant 240 : index
    %c0_5 = arith.constant 0 : index
    %5 = vector.load %arg2[%c240, %c0_5] : memref<248x64xf32, #tpu.memory_space<vmem>>, vector<8x64xf32>
    %6 = vector.extract_strided_slice %5 {offsets = [0, 0], sizes = [1, 64], strides = [1, 1]} : vector<8x64xf32> to vector<1x64xf32>
    %7 = vector.extract_strided_slice %5 {offsets = [1, 0], sizes = [1, 64], strides = [1, 1]} : vector<8x64xf32> to vector<1x64xf32>
    %8 = vector.extract_strided_slice %5 {offsets = [2, 0], sizes = [1, 64], strides = [1, 1]} : vector<8x64xf32> to vector<1x64xf32>
    %9 = vector.extract_strided_slice %5 {offsets = [3, 0], sizes = [1, 64], strides = [1, 1]} : vector<8x64xf32> to vector<1x64xf32>
    %10 = vector.extract_strided_slice %5 {offsets = [4, 0], sizes = [1, 64], strides = [1, 1]} : vector<8x64xf32> to vector<1x64xf32>
    %11 = vector.extract_strided_slice %5 {offsets = [5, 0], sizes = [1, 64], strides = [1, 1]} : vector<8x64xf32> to vector<1x64xf32>
    %12 = vector.extract_strided_slice %5 {offsets = [6, 0], sizes = [1, 64], strides = [1, 1]} : vector<8x64xf32> to vector<1x64xf32>
    %13 = vector.extract_strided_slice %5 {offsets = [7, 0], sizes = [1, 64], strides = [1, 1]} : vector<8x64xf32> to vector<1x64xf32>
    %c0_6 = arith.constant 0 : index
    %c0_7 = arith.constant 0 : index
    %14 = vector.load %arg0[%c0_6, %c0_7] : memref<8x16xf32, #tpu.memory_space<vmem>>, vector<8x16xf32>
    %cst = arith.constant dense<0.000000e+00> : vector<8x64xf32>
    %15 = tpu.matmul %14, %0, %cst {dimension_numbers = #tpu.dot_dimension_numbers<[1], [0], [0], [1], [0, 0, 1, 1], [], []>} : vector<8x16xf32>, vector<16x64xf32>, vector<8x64xf32> -> vector<8x64xf32>
    %c0_8 = arith.constant 0 : index
    %c0_9 = arith.constant 0 : index
    %16 = vector.load %arg1[%c0_8, %c0_9] : memref<8x32xf32, #tpu.memory_space<vmem>>, vector<8x32xf32>
    %cst_10 = arith.constant dense<0.000000e+00> : vector<8x64xf32>
    %17 = tpu.matmul %16, %1, %cst_10 {dimension_numbers = #tpu.dot_dimension_numbers<[1], [0], [0], [1], [0, 0, 1, 1], [], []>} : vector<8x32xf32>, vector<32x64xf32>, vector<8x64xf32> -> vector<8x64xf32>
    %18 = vector.broadcast %6 : vector<1x64xf32> to vector<8x64xf32>
    %19 = arith.addf %17, %18 : vector<8x64xf32>
    %cst_11 = arith.constant 0.000000e+00 : f32
    %20 = vector.broadcast %cst_11 : f32 to vector<8x64xf32>
    %21 = arith.maximumf %19, %20 : vector<8x64xf32>
    %cst_12 = arith.constant dense<0.000000e+00> : vector<64xf32>
    %22 = vector.multi_reduction <add>, %21, %cst_12 [0] : vector<8x64xf32> to vector<64xf32>
    %23 = vector.shape_cast %22 : vector<64xf32> to vector<1x64xf32>
    %cst_13 = arith.constant 8.000000e+00 : f32
    %24 = vector.broadcast %cst_13 : f32 to vector<1x64xf32>
    %25 = arith.divf %23, %24 : vector<1x64xf32>
    %26 = arith.mulf %21, %21 : vector<8x64xf32>
    %cst_14 = arith.constant dense<0.000000e+00> : vector<64xf32>
    %27 = vector.multi_reduction <add>, %26, %cst_14 [0] : vector<8x64xf32> to vector<64xf32>
    %28 = vector.shape_cast %27 : vector<64xf32> to vector<1x64xf32>
    %cst_15 = arith.constant 8.000000e+00 : f32
    %29 = vector.broadcast %cst_15 : f32 to vector<1x64xf32>
    %30 = arith.divf %28, %29 : vector<1x64xf32>
    %31 = arith.mulf %25, %25 : vector<1x64xf32>
    %32 = arith.subf %30, %31 : vector<1x64xf32>
    %cst_16 = arith.constant 0.000000e+00 : f32
    %33 = vector.broadcast %cst_16 : f32 to vector<1x64xf32>
    %34 = arith.maximumf %32, %33 : vector<1x64xf32>
    %cst_17 = arith.constant 9.99999974E-6 : f32
    %35 = vector.broadcast %cst_17 : f32 to vector<1x64xf32>
    %36 = arith.addf %34, %35 : vector<1x64xf32>
    %37 = math.rsqrt %36 : vector<1x64xf32>
    %38 = arith.mulf %7, %37 : vector<1x64xf32>
    %39 = arith.mulf %25, %38 : vector<1x64xf32>
    %40 = arith.subf %8, %39 : vector<1x64xf32>
    %41 = vector.broadcast %38 : vector<1x64xf32> to vector<8x64xf32>
    %42 = arith.mulf %21, %41 : vector<8x64xf32>
    %43 = vector.broadcast %40 : vector<1x64xf32> to vector<8x64xf32>
    %44 = arith.addf %42, %43 : vector<8x64xf32>
    %cst_18 = arith.constant dense<0.000000e+00> : vector<8x64xf32>
    %45 = tpu.matmul %44, %2, %cst_18 {dimension_numbers = #tpu.dot_dimension_numbers<[1], [0], [0], [1], [0, 0, 1, 1], [], []>} : vector<8x64xf32>, vector<64x64xf32>, vector<8x64xf32> -> vector<8x64xf32>
    %46 = vector.broadcast %9 : vector<1x64xf32> to vector<8x64xf32>
    %47 = arith.addf %45, %46 : vector<8x64xf32>
    %cst_19 = arith.constant 0.000000e+00 : f32
    %48 = vector.broadcast %cst_19 : f32 to vector<8x64xf32>
    %49 = arith.maximumf %47, %48 : vector<8x64xf32>
    %cst_20 = arith.constant dense<0.000000e+00> : vector<64xf32>
    %50 = vector.multi_reduction <add>, %49, %cst_20 [0] : vector<8x64xf32> to vector<64xf32>
    %51 = vector.shape_cast %50 : vector<64xf32> to vector<1x64xf32>
    %cst_21 = arith.constant 8.000000e+00 : f32
    %52 = vector.broadcast %cst_21 : f32 to vector<1x64xf32>
    %53 = arith.divf %51, %52 : vector<1x64xf32>
    %54 = arith.mulf %49, %49 : vector<8x64xf32>
    %cst_22 = arith.constant dense<0.000000e+00> : vector<64xf32>
    %55 = vector.multi_reduction <add>, %54, %cst_22 [0] : vector<8x64xf32> to vector<64xf32>
    %56 = vector.shape_cast %55 : vector<64xf32> to vector<1x64xf32>
    %cst_23 = arith.constant 8.000000e+00 : f32
    %57 = vector.broadcast %cst_23 : f32 to vector<1x64xf32>
    %58 = arith.divf %56, %57 : vector<1x64xf32>
    %59 = arith.mulf %53, %53 : vector<1x64xf32>
    %60 = arith.subf %58, %59 : vector<1x64xf32>
    %cst_24 = arith.constant 0.000000e+00 : f32
    %61 = vector.broadcast %cst_24 : f32 to vector<1x64xf32>
    %62 = arith.maximumf %60, %61 : vector<1x64xf32>
    %cst_25 = arith.constant 9.99999974E-6 : f32
    %63 = vector.broadcast %cst_25 : f32 to vector<1x64xf32>
    %64 = arith.addf %62, %63 : vector<1x64xf32>
    %65 = math.rsqrt %64 : vector<1x64xf32>
    %66 = arith.mulf %10, %65 : vector<1x64xf32>
    %67 = arith.mulf %53, %66 : vector<1x64xf32>
    %68 = arith.subf %11, %67 : vector<1x64xf32>
    %69 = vector.broadcast %66 : vector<1x64xf32> to vector<8x64xf32>
    %70 = arith.mulf %49, %69 : vector<8x64xf32>
    %71 = vector.broadcast %68 : vector<1x64xf32> to vector<8x64xf32>
    %72 = arith.addf %70, %71 : vector<8x64xf32>
    %cst_26 = arith.constant dense<0.000000e+00> : vector<8x64xf32>
    %73 = tpu.matmul %72, %3, %cst_26 {dimension_numbers = #tpu.dot_dimension_numbers<[1], [0], [0], [1], [0, 0, 1, 1], [], []>} : vector<8x64xf32>, vector<64x64xf32>, vector<8x64xf32> -> vector<8x64xf32>
    %74 = vector.broadcast %12 : vector<1x64xf32> to vector<8x64xf32>
    %75 = arith.addf %73, %74 : vector<8x64xf32>
    %cst_27 = arith.constant 0.000000e+00 : f32
    %76 = vector.broadcast %cst_27 : f32 to vector<8x64xf32>
    %77 = arith.maximumf %75, %76 : vector<8x64xf32>
    %cst_28 = arith.constant dense<0.000000e+00> : vector<8x64xf32>
    %78 = tpu.matmul %77, %4, %cst_28 {dimension_numbers = #tpu.dot_dimension_numbers<[1], [0], [0], [1], [0, 0, 1, 1], [], []>} : vector<8x64xf32>, vector<64x64xf32>, vector<8x64xf32> -> vector<8x64xf32>
    %79 = arith.addf %15, %78 : vector<8x64xf32>
    %80 = vector.broadcast %13 : vector<1x64xf32> to vector<8x64xf32>
    %81 = arith.addf %79, %80 : vector<8x64xf32>
    %c0_29 = arith.constant 0 : index
    %c0_30 = arith.constant 0 : index
    %82 = vector.load %arg3[%c0_29, %c0_30] : memref<8x64xf32, #tpu.memory_space<vmem>>, vector<8x64xf32>
    tpu.vector_store %arg3[%c0_29, %c0_30], %81 {strides = array<i32>} : memref<8x64xf32, #tpu.memory_space<vmem>>, vector<8x64xf32>,
    return
  }
}

</mosaic_0001>

<llo_original>
// kernel: fwd.1
$region0: #{fwd.1}
  #allocation0 [shape = 'u32[]', space=smem, size = 0x4, offset = 0x4, fixed_abs, tag = 'smem constant byte address 0x4 - core index']
  #allocation1 [shape = 'u32[72,128]{1,0:T(1,128)}', space=vmem, size = 0x9000, scoped, tag = 'internal scratch']
  %s0 = inlined_call_operand.vmem [shape: f32[8,16], index: 0, kind: input, shape index: {}]
  %s1 = inlined_call_operand.vmem [shape: f32[8,32], index: 1, kind: input, shape index: {}]
  %s2 = inlined_call_operand.vmem [shape: f32[248,64], index: 2, kind: input, shape index: {}]
  %s3 = inlined_call_operand.hbm [shape: f32[8,64], index: 3, kind: output, shape index: {}]
  %s4 = sld [smem:[#allocation0]]
  $region22: #{fwd.1} parent=0
    _
  %s6 = ssub.s32 1, %s4
  %s7 = scalar_select 0, %s6, %s4
  $region1: #{fwd.1} parent=0
    #allocation2 [shape = 'u8[4096]{0}', space=vmem, size = 0x1000, scoped, tag = 'output window, operand 0, single buffered']
    #allocation3 [shape = 's32[1]{0}', space=sflag, size = 0x4, scoped, tag = 'scoped memory for fwd.1']
    %8 = vsyncpa [#allocation3], 0
    // Predicated region
    $region2: #{fwd.1} parent=1 // pred_check
      _
    $region3: #{fwd.1} parent=1 // pred_check_branch
      %10 = sbr.rel (0) target = $region5
    $region4: #{fwd.1} parent=1 // pred_region
      _
    $region5: #{fwd.1} parent=1 // pred_fallthru
      _
    // Predicated region
    $region6: #{fwd.1} parent=1 // pred_check
      _
    $region7: #{fwd.1} parent=1 // pred_check_branch
      %12 = sbr.rel (0) target = $region9
    $region8: #{fwd.1} parent=1 // pred_region
      _
    $region9: #{fwd.1} parent=1 // pred_fallthru
      _
    // Predicated region
    $region10: #{fwd.1} parent=1 // pred_check
      _
    $region11: #{fwd.1} parent=1 // pred_check_branch
      %14 = sbr.rel (0) target = $region13
    $region12: #{fwd.1} parent=1 // pred_region
      _
    $region13: #{fwd.1} parent=1 // pred_fallthru
      _
    %v15 = vld [vmem:[%s2] sm:$0xff]
    %v16 = vld [vmem:[%s2 + $0x8] sm:$0xff]
    %v17 = vld [vmem:[%s2 + $0x10] sm:$0xff]
    %v18 = vld [vmem:[%s2 + $0x18] sm:$0xff]
    %v19 = vld [vmem:[%s2 + $0x20] sm:$0xff]
    %v20 = vld [vmem:[%s2 + $0x28] sm:$0xff]
    %v21 = vld [vmem:[%s2 + $0x30] sm:$0xff]
    %v22 = vld [vmem:[%s2 + $0x38] sm:$0xff]
    %v23 = vld [vmem:[%s2 + $0x40] sm:$0xff]
    %v24 = vld [vmem:[%s2 + $0x48] sm:$0xff]
    %v25 = vld [vmem:[%s2 + $0x50] sm:$0xff]
    %v26 = vld [vmem:[%s2 + $0x58] sm:$0xff]
    %v27 = vld [vmem:[%s2 + $0x60] sm:$0xff]
    %v28 = vld [vmem:[%s2 + $0x68] sm:$0xff]
    %v29 = vld [vmem:[%s2 + $0x70] sm:$0xff]
    %v30 = vld [vmem:[%s2 + $0x78] sm:$0xff]
    %v31 = vld [vmem:[%s2 + $0x80] sm:$0xff]
    %v32 = vld [vmem:[%s2 + $0x88] sm:$0xff]
    %v33 = vld [vmem:[%s2 + $0x90] sm:$0xff]
    %v34 = vld [vmem:[%s2 + $0x98] sm:$0xff]
    %v35 = vld [vmem:[%s2 + $0xa0] sm:$0xff]
    %v36 = vld [vmem:[%s2 + $0xa8] sm:$0xff]
    %v37 = vld [vmem:[%s2 + $0xb0] sm:$0xff]
    %v38 = vld [vmem:[%s2 + $0xb8] sm:$0xff]
    %v39 = vld [vmem:[%s2 + $0xc0] sm:$0xff]
    %v40 = vld [vmem:[%s2 + $0xc8] sm:$0xff]
    %v41 = vld [vmem:[%s2 + $0xd0] sm:$0xff]
    %v42 = vld [vmem:[%s2 + $0xd8] sm:$0xff]
    %v43 = vld [vmem:[%s2 + $0xe0] sm:$0xff]
    %v44 = vld [vmem:[%s2 + $0xe8] sm:$0xff]
    %v45 = vld [vmem:[%s2 + $0xf0] sm:$0xff]
    %v46 = vld [vmem:[%s0] sm:$0xff]
    %v47 = vld [vmem:[%s1] sm:$0xff]
    %v48 = vperm.slane %v45, 0
    %vm49 = vcmask 261120
    %v51 = vsel %vm49, %v47, 0
    %53 = vmatpush.msra.mxu0 0.0
    %54 = vmatpush.msra.mxu0 0.0
    %55 = vmatpush.msra.mxu0 0.0
    %56 = vmatpush.msra.mxu0 0.0
    %57 = vmatpush.msra.mxu0 0.0
    %58 = vmatpush.msra.mxu0 0.0
    %59 = vmatpush.msra.mxu0 0.0
    %60 = vmatpush.msra.mxu0 0.0
    %61 = vmatpush.msra.mxu0 0.0
    %62 = vmatpush.msra.mxu0 0.0
    %63 = vmatpush.msra.mxu0 0.0
    %64 = vmatpush.msra.mxu0 0.0
    %65 = vmatpush.msra.mxu0 %v20
    %66 = vmatpush.msra.mxu0 %v19
    %67 = vmatpush.msra.mxu0 %v18
    %68 = vmatpush.msra.mxu0 %v17
    %69 = vmatmul.f32.gmra.mxu0 %v51
    %v70 = vpop.f32.mrf.mxu0
    %v71 = vadd.f32 %v48, %v70
    %72 = vdwg.mxu0
    %v73 = vmax.f32 %v71, 0.0
    %vm74 = vcmask 523264
    %v75 = vsel %vm74, %v73, 0.0
    %v76 = vrot.slane %v75, 4
    %v77 = vadd.f32 %v75, %v76
    %v78 = vrot.slane %v77, 2
    %v79 = vadd.f32 %v77, %v78
    %v80 = vrot.slane %v79, 1
    %v81 = vadd.f32 %v79, %v80
    %v82 = vrcp.pop 8.0
    %v83 = vmul.f32 8.0, %v82
    %v84 = vsub.f32 1.0, %v83
    %v85 = vmul.f32 %v82, %v84
    %v86 = vadd.f32 %v82, %v85
    %vm87 = vweird.f32 %v82
    %v88 = vsel %vm87, %v82, %v86
    %v89 = vmul.f32 %v81, %v88
    %v90 = vmul.f32 %v73, %v73
    %v91 = vsel %vm74, %v90, 0.0
    %v92 = vrot.slane %v91, 4
    %v93 = vadd.f32 %v91, %v92
    %v94 = vrot.slane %v93, 2
    %v95 = vadd.f32 %v93, %v94
    %v96 = vrot.slane %v95, 1
    %v97 = vadd.f32 %v95, %v96
    %v98 = vmul.f32 %v97, %v88
    %v99 = vmul.f32 %v89, %v89
    %v100 = vsub.f32 %v98, %v99
    %v101 = vmax.f32 %v100, 0.0
    %v102 = vadd.f32 %v101, 1e-05
    %v103 = vrsqrt.pop %v102
    %v104 = vmul.f32 %v103, %v102
    %v105 = vmul.f32 %v104, %v103
    %v106 = vmul.f32 0.5, %v105
    %v107 = vsub.f32 1.5, %v106
    %v108 = vmul.f32 %v103, %v107
    %vm109 = vweird.f32 %v102
    %vm110 = vweird.f32 %v103
    %vm111 = vmor %vm109, %vm110
    %v112 = vsel %vm111, %v103, %v108
    %v113 = vmul.f32 %v45, %v112
    %v114 = vmul.f32 %v89, %v113
    %v116 = vrot.slane %v114, 7
    %v118 = vsub.f32 %v45, %v116
    %v119 = vperm.slane %v113, 1
    %v120 = vmul.f32 %v73, %v119
    %v121 = vperm.slane %v118, 2
    %v122 = vadd.f32 %v120, %v121
    %v123 = vperm.slane %v45, 3
    %v125 = vsel %vm74, %v122, 0
    %127 = vmatpush.msra.mxu0 0.0
    %128 = vmatpush.msra.mxu0 0.0
    %129 = vmatpush.msra.mxu0 0.0
    %130 = vmatpush.msra.mxu0 0.0
    %131 = vmatpush.msra.mxu0 0.0
    %132 = vmatpush.msra.mxu0 0.0
    %133 = vmatpush.msra.mxu0 0.0
    %134 = vmatpush.msra.mxu0 0.0
    %135 = vmatpush.msra.mxu0 %v28
    %136 = vmatpush.msra.mxu0 %v27
    %137 = vmatpush.msra.mxu0 %v26
    %138 = vmatpush.msra.mxu0 %v25
    %139 = vmatpush.msra.mxu0 %v24
    %140 = vmatpush.msra.mxu0 %v23
    %141 = vmatpush.msra.mxu0 %v22
    %142 = vmatpush.msra.mxu0 %v21
    %143 = vmatmul.f32.gmra.mxu0 %v125
    %v144 = vpop.f32.mrf.mxu0
    %v145 = vadd.f32 %v123, %v144
    %146 = vdwg.mxu0
    %v147 = vmax.f32 %v145, 0.0
    %v148 = vsel %vm74, %v147, 0.0
    %v149 = vrot.slane %v148, 4
    %v150 = vadd.f32 %v148, %v149
    %v151 = vrot.slane %v150, 2
    %v152 = vadd.f32 %v150, %v151
    %v153 = vrot.slane %v152, 1
    %v154 = vadd.f32 %v152, %v153
    %v155 = vmul.f32 %v154, %v88
    %v156 = vmul.f32 %v147, %v147
    %v157 = vsel %vm74, %v156, 0.0
    %v158 = vrot.slane %v157, 4
    %v159 = vadd.f32 %v157, %v158
    %v160 = vrot.slane %v159, 2
    %v161 = vadd.f32 %v159, %v160
    %v162 = vrot.slane %v161, 1
    %v163 = vadd.f32 %v161, %v162
    %v164 = vmul.f32 %v163, %v88
    %v165 = vmul.f32 %v155, %v155
    %v166 = vsub.f32 %v164, %v165
    %v167 = vmax.f32 %v166, 0.0
    %v168 = vadd.f32 %v167, 1e-05
    %v169 = vrsqrt.pop %v168
    %v170 = vmul.f32 %v169, %v168
    %v171 = vmul.f32 %v170, %v169
    %v172 = vmul.f32 0.5, %v171
    %v173 = vsub.f32 1.5, %v172
    %v174 = vmul.f32 %v169, %v173
    %vm175 = vweird.f32 %v168
    %vm176 = vweird.f32 %v169
    %vm177 = vmor %vm175, %vm176
    %v178 = vsel %vm177, %v169, %v174
    %v179 = vmul.f32 %v45, %v178
    %v180 = vmul.f32 %v155, %v179
    %v182 = vrot.slane %v180, 7
    %v184 = vsub.f32 %v45, %v182
    %v185 = vperm.slane %v179, 4
    %v186 = vmul.f32 %v147, %v185
    %v187 = vperm.slane %v184, 5
    %v188 = vadd.f32 %v186, %v187
    %v189 = vperm.slane %v45, 6
    %v191 = vsel %vm74, %v188, 0
    %193 = vmatpush.msra.mxu0 0.0
    %194 = vmatpush.msra.mxu0 0.0
    %195 = vmatpush.msra.mxu0 0.0
    %196 = vmatpush.msra.mxu0 0.0
    %197 = vmatpush.msra.mxu0 0.0
    %198 = vmatpush.msra.mxu0 0.0
    %199 = vmatpush.msra.mxu0 0.0
    %200 = vmatpush.msra.mxu0 0.0
    %201 = vmatpush.msra.mxu0 %v36
    %202 = vmatpush.msra.mxu0 %v35
    %203 = vmatpush.msra.mxu0 %v34
    %204 = vmatpush.msra.mxu0 %v33
    %205 = vmatpush.msra.mxu0 %v32
    %206 = vmatpush.msra.mxu0 %v31
    %207 = vmatpush.msra.mxu0 %v30
    %208 = vmatpush.msra.mxu0 %v29
    %209 = vmatmul.f32.gmra.mxu0 %v191
    %v210 = vpop.f32.mrf.mxu0
    %v211 = vadd.f32 %v189, %v210
    %212 = vdwg.mxu0
    %v213 = vmax.f32 %v211, 0.0
    %v215 = vsel %vm74, %v213, 0
    %217 = vmatpush.msra.mxu0 0.0
    %218 = vmatpush.msra.mxu0 0.0
    %219 = vmatpush.msra.mxu0 0.0
    %220 = vmatpush.msra.mxu0 0.0
    %221 = vmatpush.msra.mxu0 0.0
    %222 = vmatpush.msra.mxu0 0.0
    %223 = vmatpush.msra.mxu0 0.0
    %224 = vmatpush.msra.mxu0 0.0
    %225 = vmatpush.msra.mxu0 %v44
    %226 = vmatpush.msra.mxu0 %v43
    %227 = vmatpush.msra.mxu0 %v42
    %228 = vmatpush.msra.mxu0 %v41
    %229 = vmatpush.msra.mxu0 %v40
    %230 = vmatpush.msra.mxu0 %v39
    %231 = vmatpush.msra.mxu0 %v38
    %232 = vmatpush.msra.mxu0 %v37
    %233 = vmatmul.f32.gmra.mxu0 %v215
    %v234 = vpop.f32.mrf.mxu0
    %v235 = vadd.f32 0.0, %v234
    %236 = vdwg.mxu0
    %vm237 = vcmask 130048
    %v239 = vsel %vm237, %v46, 0
    %241 = vmatpush.msra.mxu0 0.0
    %242 = vmatpush.msra.mxu0 0.0
    %243 = vmatpush.msra.mxu0 0.0
    %244 = vmatpush.msra.mxu0 0.0
    %245 = vmatpush.msra.mxu0 0.0
    %246 = vmatpush.msra.mxu0 0.0
    %247 = vmatpush.msra.mxu0 0.0
    %248 = vmatpush.msra.mxu0 0.0
    %249 = vmatpush.msra.mxu0 0.0
    %250 = vmatpush.msra.mxu0 0.0
    %251 = vmatpush.msra.mxu0 0.0
    %252 = vmatpush.msra.mxu0 0.0
    %253 = vmatpush.msra.mxu0 0.0
    %254 = vmatpush.msra.mxu0 0.0
    %255 = vmatpush.msra.mxu0 %v16
    %256 = vmatpush.msra.mxu0 %v15
    %257 = vmatmul.f32.gmra.mxu0 %v239
    %v258 = vpop.f32.mrf.mxu0
    %v259 = vadd.f32 %v235, %v258
    %260 = vdwg.mxu0
    %v261 = vperm.slane %v45, 7
    %v262 = vadd.f32 %v259, %v261
    %263 = vst.msk [vmem:[#allocation2] sm:$0xff] %vm74, %v262
    // Predicated region
    $region14: #{fwd.1} parent=1 // pred_check
      _
    $region15: #{fwd.1} parent=1 // pred_check_branch
      %265 = sbr.rel (0) target = $region17
    $region16: #{fwd.1} parent=1 // pred_region
      %267 = vsyncadd [#allocation3], 0
      %s269 = sshll.u32 [#allocation2], 4
      %s270 = int_to_ptr.vmem [resolvable:$true] %s269
      %s271 = sshll.u32 %s3, 4
      %s272 = int_to_ptr.hbm [resolvable:$true] %s271
      %274 = dma.vmem_to_hbm [thread:$0]  %s270, 128, %s272, [#allocation3]
    $region17: #{fwd.1} parent=1 // pred_fallthru
      _
    // Predicated region
    $region18: #{fwd.1} parent=1 // pred_check
      _
    $region19: #{fwd.1} parent=1 // pred_check_branch
      %276 = sbr.rel (0) target = $region21
    $region20: #{fwd.1} parent=1 // pred_region
      %278 = dma.done [#allocation3], 128
    $region21: #{fwd.1} parent=1 // pred_fallthru
      _
    %279 = vsyncpa [#allocation3], 1

</llo_original>
